<compile_context>
chip_gen: v7x
topology: tpu7x:2x2x1
jax: 0.10.0
libtpu: 0.0.40
codegen_flags: <defaults>
</compile_context>

<pallas_src>
import jax
import jax.numpy as jnp
from jax.experimental import pallas as pl
from jax.experimental.pallas import tpu as pltpu

# ----------------------------- configuration --------------------------------
INPUT_DIM = 16
NUM_LEVELS = 3
NUM_CLASSES_PER_LEVEL = [3, 6, 12]          # default from the module __init__
LEVEL_DIMS = [32, 16, 8]                    # tangent-space dims per WuBu level
OUTPUT_DIM = sum(NUM_CLASSES_PER_LEVEL)     # 21
BATCH = 8
PAD = 128                                   # lane-dense padding for all tiles

# Lane offsets of each level's activation inside the shared 128-lane vreg.
OFF0 = 0
OFF1 = LEVEL_DIMS[0]                        # 32
OFF2 = LEVEL_DIMS[0] + LEVEL_DIMS[1]        # 48
CONCAT_DIM = sum(LEVEL_DIMS)                # 56

# Weight-slab layout (bf16, [4, 128, 128]):
#   0: A0 = w_in @ w0          real block rows 0..15,  cols  0..31
#   1: A1 = t01  @ w1          real block rows 0..31,  cols 32..47
#   2: A2 = t12  @ w2          real block rows 32..47, cols 48..55
#   3: wo  (56 x 21)           real block rows 0..55,  cols  0..20
# Bias-slab layout (f32, [4, 8, 128]): 0:c0(@0..31) 1:c1(@32..47) 2:c2(@48..55) 3:b_out(@0..20)


# ------------------------------ Pallas kernel -------------------------------
def wubu_classifier_kernel(x_ref, w_ref, b_ref, out_ref):
    # x_ref: bf16 (B,128); w_ref: bf16 (4,128,128); b_ref: f32 (4,8,128); out: f32 (B,128)

    def layer(h_bf16, i):
        # bf16 x bf16 MXU matmul with f32 accumulation; f32 bias add + tanh.
        # (At batch=8 the (8,128) bias tile adds directly; for a batch grid,
        #  pin the bias spec to block 0 and broadcast its first sublane row.)
        pre = jnp.dot(h_bf16, w_ref[i], preferred_element_type=jnp.float32) + b_ref[i]
        return jnp.tanh(pre)

    t0 = layer(x_ref[...], 0)                       # real data in lanes  0..31
    t1 = layer(t0.astype(jnp.bfloat16), 1)          # real data in lanes 32..47
    t2 = layer(t1.astype(jnp.bfloat16), 2)          # real data in lanes 48..55

    # Disjoint lane ranges + exact zeros elsewhere => plain adds ARE the concat.
    concat = (t0 + t1 + t2).astype(jnp.bfloat16)

    out = jnp.dot(concat, w_ref[3], preferred_element_type=jnp.float32) + b_ref[3]
    out_ref[...] = out.astype(out_ref.dtype)        # full (B,128) unmasked store


# ------------------------------- wrapper -------------------------------------
def wubu_hierarchical_classifier(x, w_slab, b_slab):
    """Returns a list of per-level logits, mirroring the PyTorch forward()."""
    batch = x.shape[0]
    assert batch == b_slab.shape[1], "toy path assumes batch == bias sublane tile (8)"

    # Lane-dense bf16 input: pad features to 128 lanes (padded weight rows are
    # zero, so the math is unchanged).
    x_pad = (
        jnp.zeros((batch, PAD), jnp.bfloat16)
        .at[:, : x.shape[1]]
        .set(x.astype(jnp.bfloat16))
    )

    vmem = pl.BlockSpec(memory_space=pltpu.MemorySpace.VMEM)
    cost = pl.CostEstimate(
        flops=2 * 4 * batch * PAD * PAD,                       # 4 MXU matmuls
        transcendentals=3 * batch * PAD,                       # 3 tanh tiles
        bytes_accessed=(x_pad.size * 2 + w_slab.size * 2
                        + b_slab.size * 4 + batch * PAD * 4),
    )
    combined = pl.pallas_call(
        wubu_classifier_kernel,
        out_shape=jax.ShapeDtypeStruct((batch, PAD), jnp.float32),
        in_specs=[vmem, vmem, vmem],
        out_specs=vmem,
        cost_estimate=cost,
    )(x_pad, w_slab, b_slab)

    # Glue: slice the combined output into hierarchy-level logits (tiny XLA
    # slices; lanes 21..127 of `combined` are exactly zero padding).
    level_outputs, start = [], 0
    for num_classes in NUM_CLASSES_PER_LEVEL:
        level_outputs.append(combined[:, start:start + num_classes])
        start += num_classes
    return level_outputs


# --------------------------- deterministic params ----------------------------
def init_raw_params(key):
    def dense(k, fan_in, fan_out):
        kw, kb = jax.random.split(k)
        scale = 1.0 / jnp.sqrt(jnp.float32(fan_in))
        w = jax.random.uniform(kw, (fan_in, fan_out), jnp.float32, -scale, scale)
        b = jax.random.uniform(kb, (fan_out,), jnp.float32, -scale, scale)
        return w, b

    keys = jax.random.split(key, 7)
    w_in, b_in = dense(keys[0], INPUT_DIM, LEVEL_DIMS[0])
    w0, b0 = dense(keys[1], LEVEL_DIMS[0], LEVEL_DIMS[0])
    t01, bt01 = dense(keys[2], LEVEL_DIMS[0], LEVEL_DIMS[1])
    w1, b1 = dense(keys[3], LEVEL_DIMS[1], LEVEL_DIMS[1])
    t12, bt12 = dense(keys[4], LEVEL_DIMS[1], LEVEL_DIMS[2])
    w2, b2 = dense(keys[5], LEVEL_DIMS[2], LEVEL_DIMS[2])
    # Output projection over the concatenated level outputs (true fan-in 56).
    wo, b_out = dense(keys[6], CONCAT_DIM, OUTPUT_DIM)
    return (w_in, b_in, w0, b0, t01, bt01, w1, b1, t12, bt12, w2, b2, wo, b_out)


def fuse_params(raw):
    """Host-side affine fusion of each adjacent linear pair (exact in f32)."""
    (w_in, b_in, w0, b0, t01, bt01, w1, b1, t12, bt12, w2, b2, wo, b_out) = raw
    A0 = w_in @ w0
    c0 = b_in @ w0 + b0
    A1 = t01 @ w1
    c1 = bt01 @ w1 + b1
    A2 = t12 @ w2
    c2 = bt12 @ w2 + b2
    return A0, c0, A1, c1, A2, c2, wo, b_out


def pack_slabs(fused):
    """Pack fused params into one bf16 weight slab and one small f32 bias slab."""
    A0, c0, A1, c1, A2, c2, wo, b_out = fused

    def place_w(w, r, c):
        return (jnp.zeros((PAD, PAD), jnp.float32)
                .at[r:r + w.shape[0], c:c + w.shape[1]].set(w))

    def place_b(b, c):
        row = jnp.zeros((PAD,), jnp.float32).at[c:c + b.shape[0]].set(b)
        return jnp.tile(row[None, :], (8, 1))     # one (8,128) tile, batch-independent

    w_slab = jnp.stack([
        place_w(A0, 0, OFF0),       # x lanes 0..15   -> t0 lanes  0..31
        place_w(A1, OFF0, OFF1),    # t0 lanes 0..31  -> t1 lanes 32..47
        place_w(A2, OFF1, OFF2),    # t1 lanes 32..47 -> t2 lanes 48..55
        place_w(wo, 0, 0),          # concat lanes 0..55 -> logits lanes 0..20
    ]).astype(jnp.bfloat16)                                    # [4, 128, 128] bf16
    b_slab = jnp.stack([
        place_b(c0, OFF0), place_b(c1, OFF1), place_b(c2, OFF2), place_b(b_out, 0),
    ])                                                          # [4, 8, 128] f32
    return w_slab, b_slab


# ------------------------------ references -----------------------------------
def _split(combined):
    outs, start = [], 0
    for nc in NUM_CLASSES_PER_LEVEL:
        outs.append(combined[:, start:start + nc])
        start += nc
    return outs


def reference_forward_f32(x, raw):
    """Original (unfused, full-f32) tangent-space skeleton."""
    (w_in, b_in, w0, b0, t01, bt01, w1, b1, t12, bt12, w2, b2, wo, b_out) = raw
    h0 = x @ w_in + b_in
    t0 = jnp.tanh(h0 @ w0 + b0)
    h1 = t0 @ t01 + bt01
    t1 = jnp.tanh(h1 @ w1 + b1)
    h2 = t1 @ t12 + bt12
    t2 = jnp.tanh(h2 @ w2 + b2)
    combined = jnp.concatenate([t0, t1, t2], axis=-1) @ wo + b_out
    return _split(combined)


def reference_forward_bf16(x, raw):
    """Pure-JAX emulation of the kernel's fused bf16-weight / f32-accumulate path."""
    A0, c0, A1, c1, A2, c2, wo, b_out = fuse_params(raw)
    bw = lambda w: w.astype(jnp.bfloat16).astype(jnp.float32)
    bx = lambda v: v.astype(jnp.bfloat16).astype(jnp.float32)
    t0 = jnp.tanh(bx(x) @ bw(A0) + c0)
    t1 = jnp.tanh(bx(t0) @ bw(A1) + c1)
    t2 = jnp.tanh(bx(t1) @ bw(A2) + c2)
    combined = bx(jnp.concatenate([t0, t1, t2], axis=-1)) @ bw(wo) + b_out
    return _split(combined)


# --------------------------------- main --------------------------------------
if __name__ == "__main__":
    key = jax.random.PRNGKey(0)
    k_x, k_p = jax.random.split(key)

    x = jax.random.normal(k_x, (BATCH, INPUT_DIM), dtype=jnp.float32)
    raw = init_raw_params(k_p)
    w_slab, b_slab = pack_slabs(fuse_params(raw))

    level_outputs = wubu_hierarchical_classifier(x, w_slab, b_slab)
    for out in level_outputs:
        jax.block_until_ready(out)

    # Shapes match the PyTorch forward() contract.
    assert [o.shape for o in level_outputs] == [
        (BATCH, c) for c in NUM_CLASSES_PER_LEVEL
    ]

    # Tight check: kernel vs pure-JAX emulation of the same fused bf16 path.
    ref_bf16 = reference_forward_bf16(x, raw)
    for got, want in zip(level_outputs, ref_bf16):
        assert jnp.allclose(got, want, atol=1e-2, rtol=1e-2), float(
            jnp.max(jnp.abs(got - want))
        )

    # Coarse sanity check against the original unfused full-f32 path (the only
    # differences are bf16 weight/activation quantization of the MXU operands).
    ref_f32 = reference_forward_f32(x, raw)
    for got, want in zip(level_outputs, ref_f32):
        assert float(jnp.max(jnp.abs(got - want))) < 0.25

    print("KERNEL_OK")
</pallas_src>

<mosaic_0001>
module attributes {stable_mosaic.version = 11 : i64} {
  func.func @wubu_classifier_kernel(%arg0: memref<8x128xbf16, #tpu.memory_space<vmem>>, %arg1: memref<4x128x128xbf16, #tpu.memory_space<vmem>>, %arg2: memref<4x8x128xf32, #tpu.memory_space<vmem>>, %arg3: memref<8x128xf32, #tpu.memory_space<vmem>>) attributes {dimension_semantics = [], scalar_prefetch = 0 : i64, scratch_operands = 0 : i64, tpu.core_type = #tpu.core_type<tc>} {
    %c0 = arith.constant 0 : index
    %c0_0 = arith.constant 0 : index
    %0 = vector.load %arg0[%c0, %c0_0] : memref<8x128xbf16, #tpu.memory_space<vmem>>, vector<8x128xbf16>
    %c0_1 = arith.constant 0 : index
    %c0_2 = arith.constant 0 : index
    %c0_3 = arith.constant 0 : index
    %1 = vector.load %arg1[%c0_1, %c0_2, %c0_3] : memref<4x128x128xbf16, #tpu.memory_space<vmem>>, vector<1x128x128xbf16>
    %2 = vector.shape_cast %1 : vector<1x128x128xbf16> to vector<128x128xbf16>
    %cst = arith.constant dense<0.000000e+00> : vector<8x128xf32>
    %3 = tpu.matmul %0, %2, %cst {dimension_numbers = #tpu.dot_dimension_numbers<[1], [0], [0], [1], [0, 0, 1, 1], [], []>} : vector<8x128xbf16>, vector<128x128xbf16>, vector<8x128xf32> -> vector<8x128xf32>
    %c0_4 = arith.constant 0 : index
    %c0_5 = arith.constant 0 : index
    %c0_6 = arith.constant 0 : index
    %4 = vector.load %arg2[%c0_4, %c0_5, %c0_6] : memref<4x8x128xf32, #tpu.memory_space<vmem>>, vector<1x8x128xf32>
    %5 = vector.shape_cast %4 : vector<1x8x128xf32> to vector<8x128xf32>
    %6 = arith.addf %3, %5 : vector<8x128xf32>
    %7 = math.tanh %6 : vector<8x128xf32>
    %8 = arith.truncf %7 : vector<8x128xf32> to vector<8x128xbf16>
    %c1 = arith.constant 1 : index
    %c0_7 = arith.constant 0 : index
    %c0_8 = arith.constant 0 : index
    %9 = vector.load %arg1[%c1, %c0_7, %c0_8] : memref<4x128x128xbf16, #tpu.memory_space<vmem>>, vector<1x128x128xbf16>
    %10 = vector.shape_cast %9 : vector<1x128x128xbf16> to vector<128x128xbf16>
    %cst_9 = arith.constant dense<0.000000e+00> : vector<8x128xf32>
    %11 = tpu.matmul %8, %10, %cst_9 {dimension_numbers = #tpu.dot_dimension_numbers<[1], [0], [0], [1], [0, 0, 1, 1], [], []>} : vector<8x128xbf16>, vector<128x128xbf16>, vector<8x128xf32> -> vector<8x128xf32>
    %c1_10 = arith.constant 1 : index
    %c0_11 = arith.constant 0 : index
    %c0_12 = arith.constant 0 : index
    %12 = vector.load %arg2[%c1_10, %c0_11, %c0_12] : memref<4x8x128xf32, #tpu.memory_space<vmem>>, vector<1x8x128xf32>
    %13 = vector.shape_cast %12 : vector<1x8x128xf32> to vector<8x128xf32>
    %14 = arith.addf %11, %13 : vector<8x128xf32>
    %15 = math.tanh %14 : vector<8x128xf32>
    %16 = arith.truncf %15 : vector<8x128xf32> to vector<8x128xbf16>
    %c2 = arith.constant 2 : index
    %c0_13 = arith.constant 0 : index
    %c0_14 = arith.constant 0 : index
    %17 = vector.load %arg1[%c2, %c0_13, %c0_14] : memref<4x128x128xbf16, #tpu.memory_space<vmem>>, vector<1x128x128xbf16>
    %18 = vector.shape_cast %17 : vector<1x128x128xbf16> to vector<128x128xbf16>
    %cst_15 = arith.constant dense<0.000000e+00> : vector<8x128xf32>
    %19 = tpu.matmul %16, %18, %cst_15 {dimension_numbers = #tpu.dot_dimension_numbers<[1], [0], [0], [1], [0, 0, 1, 1], [], []>} : vector<8x128xbf16>, vector<128x128xbf16>, vector<8x128xf32> -> vector<8x128xf32>
    %c2_16 = arith.constant 2 : index
    %c0_17 = arith.constant 0 : index
    %c0_18 = arith.constant 0 : index
    %20 = vector.load %arg2[%c2_16, %c0_17, %c0_18] : memref<4x8x128xf32, #tpu.memory_space<vmem>>, vector<1x8x128xf32>
    %21 = vector.shape_cast %20 : vector<1x8x128xf32> to vector<8x128xf32>
    %22 = arith.addf %19, %21 : vector<8x128xf32>
    %23 = math.tanh %22 : vector<8x128xf32>
    %24 = arith.addf %7, %15 : vector<8x128xf32>
    %25 = arith.addf %24, %23 : vector<8x128xf32>
    %26 = arith.truncf %25 : vector<8x128xf32> to vector<8x128xbf16>
    %c3 = arith.constant 3 : index
    %c0_19 = arith.constant 0 : index
    %c0_20 = arith.constant 0 : index
    %27 = vector.load %arg1[%c3, %c0_19, %c0_20] : memref<4x128x128xbf16, #tpu.memory_space<vmem>>, vector<1x128x128xbf16>
    %28 = vector.shape_cast %27 : vector<1x128x128xbf16> to vector<128x128xbf16>
    %cst_21 = arith.constant dense<0.000000e+00> : vector<8x128xf32>
    %29 = tpu.matmul %26, %28, %cst_21 {dimension_numbers = #tpu.dot_dimension_numbers<[1], [0], [0], [1], [0, 0, 1, 1], [], []>} : vector<8x128xbf16>, vector<128x128xbf16>, vector<8x128xf32> -> vector<8x128xf32>
    %c3_22 = arith.constant 3 : index
    %c0_23 = arith.constant 0 : index
    %c0_24 = arith.constant 0 : index
    %30 = vector.load %arg2[%c3_22, %c0_23, %c0_24] : memref<4x8x128xf32, #tpu.memory_space<vmem>>, vector<1x8x128xf32>
    %31 = vector.shape_cast %30 : vector<1x8x128xf32> to vector<8x128xf32>
    %32 = arith.addf %29, %31 : vector<8x128xf32>
    %c0_25 = arith.constant 0 : index
    %c0_26 = arith.constant 0 : index
    %33 = vector.load %arg3[%c0_25, %c0_26] : memref<8x128xf32, #tpu.memory_space<vmem>>, vector<8x128xf32>
    tpu.vector_store %arg3[%c0_25, %c0_26], %32 {strides = array<i32>} : memref<8x128xf32, #tpu.memory_space<vmem>>, vector<8x128xf32>,
    return
  }
}

</mosaic_0001>

<llo_original>
// kernel: tpu_custom_call.1
$region0: #{tpu_custom_call.1}
  #allocation0 [shape = 'u32[]', space=smem, size = 0x4, offset = 0x4, fixed_abs, tag = 'smem constant byte address 0x4 - core index']
  #allocation1 [shape = 'u32[144,128]{1,0:T(1,128)}', space=vmem, size = 0x12000, scoped, tag = 'internal scratch']
  %s0 = inlined_call_operand.hbm [shape: bf16[8,128], index: 0, kind: input, shape index: {}]
  %s1 = inlined_call_operand.hbm [shape: bf16[4,128,128], index: 1, kind: input, shape index: {}]
  %s2 = inlined_call_operand.hbm [shape: f32[4,8,128], index: 2, kind: input, shape index: {}]
  %s3 = inlined_call_operand.hbm [shape: f32[8,128], index: 3, kind: output, shape index: {}]
  %s4 = sld [smem:[#allocation0]]
  $region34: #{tpu_custom_call.1} parent=0
    _
  %s6 = ssub.s32 1, %s4
  %s7 = scalar_select 0, %s6, %s4
  $region1: #{tpu_custom_call.1} parent=0
    #allocation2 [shape = 'u8[2048]{0}', space=vmem, size = 0x800, scoped, tag = 'input window, operand 0, single buffered']
    #allocation3 [shape = 's32[1]{0}', space=sflag, size = 0x4, scoped, tag = 'scoped memory for tpu_custom_call.1']
    #allocation4 [shape = 's32[1]{0}', space=sflag, size = 0x4, scoped, tag = 'scoped memory for tpu_custom_call.1']
    #allocation5 [shape = 'u8[131072]{0}', space=vmem, size = 0x20000, scoped, tag = 'input window, operand 1, single buffered']
    #allocation6 [shape = 's32[1]{0}', space=sflag, size = 0x4, scoped, tag = 'scoped memory for tpu_custom_call.1']
    #allocation7 [shape = 'u8[16384]{0}', space=vmem, size = 0x4000, scoped, tag = 'input window, operand 2, single buffered']
    #allocation8 [shape = 'u8[4096]{0}', space=vmem, size = 0x1000, scoped, tag = 'output window, operand 0, single buffered']
    %8 = vsyncpa [#allocation3], 0
    %9 = vsyncpa [#allocation6], 0
    %10 = vsyncpa [#allocation4], 0
    // Predicated region
    $region2: #{tpu_custom_call.1} parent=1 // pred_check
      _
    $region3: #{tpu_custom_call.1} parent=1 // pred_check_branch
      %12 = sbr.rel (0) target = $region5
    $region4: #{tpu_custom_call.1} parent=1 // pred_region
      %s14 = ssub.s32 64, 64
      %15 = vsyncadd [#allocation3], %s14
      %s17 = sshll.u32 [#allocation2], 4
      %s18 = int_to_ptr.vmem [resolvable:$true] %s17
      %20 = dma.hbm_to_vmem [thread:$0]  %s0, 64, %s18, [#allocation3]
    $region5: #{tpu_custom_call.1} parent=1 // pred_fallthru
      _
    // Predicated region
    $region6: #{tpu_custom_call.1} parent=1 // pred_check
      _
    $region7: #{tpu_custom_call.1} parent=1 // pred_check_branch
      %22 = sbr.rel (0) target = $region9
    $region8: #{tpu_custom_call.1} parent=1 // pred_region
      %s24 = ssub.s32 4096, 4096
      %25 = vsyncadd [#allocation6], %s24
      %s26 = sshll.u32 [#allocation5], 4
      %s27 = int_to_ptr.vmem [resolvable:$true] %s26
      %32 = dma.hbm_to_vmem [thread:$0]  %s1, 4096, %s27, [#allocation6], 64, 64, 4
    $region9: #{tpu_custom_call.1} parent=1 // pred_fallthru
      _
    // Predicated region
    $region10: #{tpu_custom_call.1} parent=1 // pred_check
      _
    $region11: #{tpu_custom_call.1} parent=1 // pred_check_branch
      %34 = sbr.rel (0) target = $region13
    $region12: #{tpu_custom_call.1} parent=1 // pred_region
      %s36 = ssub.s32 512, 512
      %37 = vsyncadd [#allocation6], %s36
      %s38 = sshll.u32 [#allocation7], 4
      %s39 = int_to_ptr.vmem [resolvable:$true] %s38
      %44 = dma.hbm_to_vmem [thread:$0]  %s2, 512, %s39, [#allocation6], 128, 128, 8
    $region13: #{tpu_custom_call.1} parent=1 // pred_fallthru
      _
    // Predicated region
    $region14: #{tpu_custom_call.1} parent=1 // pred_check
      _
    $region15: #{tpu_custom_call.1} parent=1 // pred_check_branch
      %46 = sbr.rel (0) target = $region17
    $region16: #{tpu_custom_call.1} parent=1 // pred_region
      %47 = dma.done [#allocation3], 64
    $region17: #{tpu_custom_call.1} parent=1 // pred_fallthru
      _
    // Predicated region
    $region18: #{tpu_custom_call.1} parent=1 // pred_check
      _
    $region19: #{tpu_custom_call.1} parent=1 // pred_check_branch
      %49 = sbr.rel (0) target = $region21
    $region20: #{tpu_custom_call.1} parent=1 // pred_region
      %50 = dma.done [#allocation6], 4096
    $region21: #{tpu_custom_call.1} parent=1 // pred_fallthru
      _
    // Predicated region
    $region22: #{tpu_custom_call.1} parent=1 // pred_check
      _
    $region23: #{tpu_custom_call.1} parent=1 // pred_check_branch
      %52 = sbr.rel (0) target = $region25
    $region24: #{tpu_custom_call.1} parent=1 // pred_region
      %53 = dma.done [#allocation6], 512
    $region25: #{tpu_custom_call.1} parent=1 // pred_fallthru
      _
    %v55 = vld [vmem:[#allocation2] sm:$0xf]
    %v56 = vld [vmem:[#allocation5] sm:$0xf]
    %v57 = vld [vmem:[#allocation5 + $0x4] sm:$0xf]
    %v58 = vld [vmem:[#allocation5 + $0x8] sm:$0xf]
    %v59 = vld [vmem:[#allocation5 + $0xc] sm:$0xf]
    %v60 = vld [vmem:[#allocation5 + $0x10] sm:$0xf]
    %v61 = vld [vmem:[#allocation5 + $0x14] sm:$0xf]
    %v62 = vld [vmem:[#allocation5 + $0x18] sm:$0xf]
    %v63 = vld [vmem:[#allocation5 + $0x1c] sm:$0xf]
    %v64 = vld [vmem:[#allocation5 + $0x20] sm:$0xf]
    %v65 = vld [vmem:[#allocation5 + $0x24] sm:$0xf]
    %v66 = vld [vmem:[#allocation5 + $0x28] sm:$0xf]
    %v67 = vld [vmem:[#allocation5 + $0x2c] sm:$0xf]
    %v68 = vld [vmem:[#allocation5 + $0x30] sm:$0xf]
    %v69 = vld [vmem:[#allocation5 + $0x34] sm:$0xf]
    %v70 = vld [vmem:[#allocation5 + $0x38] sm:$0xf]
    %v71 = vld [vmem:[#allocation5 + $0x3c] sm:$0xf]
    %v72 = vld [vmem:[#allocation7] sm:$0xff]
    %v89 = vunpack.c.l.b16 %v56
    %v90 = vunpack.c.l.b16 %v57
    %v91 = vunpack.c.l.b16 %v58
    %v92 = vunpack.c.l.b16 %v59
    %v93 = vunpack.c.l.b16 %v60
    %v94 = vunpack.c.l.b16 %v61
    %v95 = vunpack.c.l.b16 %v62
    %v96 = vunpack.c.l.b16 %v63
    %v97 = vunpack.c.l.b16 %v64
    %v98 = vunpack.c.l.b16 %v65
    %v99 = vunpack.c.l.b16 %v66
    %v100 = vunpack.c.l.b16 %v67
    %v101 = vunpack.c.l.b16 %v68
    %v102 = vunpack.c.l.b16 %v69
    %v103 = vunpack.c.l.b16 %v70
    %v104 = vunpack.c.l.b16 %v71
    %v105 = vpack.c.b16 %v90, %v89
    %v106 = vpack.c.b16 %v92, %v91
    %v107 = vpack.c.b16 %v94, %v93
    %v108 = vpack.c.b16 %v96, %v95
    %v109 = vpack.c.b16 %v98, %v97
    %v110 = vpack.c.b16 %v100, %v99
    %v111 = vpack.c.b16 %v102, %v101
    %v112 = vpack.c.b16 %v104, %v103
    %121 = vmatprep.subr.bf16.mxu0 0
    %122 = vmatpush1.bf16.msra.mxu0 %v105
    %123 = vmatprep.subr.bf16.mxu0 0
    %124 = vmatpush1.bf16.msra.mxu0 %v106
    %125 = vmatprep.subr.bf16.mxu0 0
    %126 = vmatpush1.bf16.msra.mxu0 %v107
    %127 = vmatprep.subr.bf16.mxu0 0
    %128 = vmatpush1.bf16.msra.mxu0 %v108
    %129 = vmatprep.subr.bf16.mxu0 0
    %130 = vmatpush1.bf16.msra.mxu0 %v109
    %131 = vmatprep.subr.bf16.mxu0 0
    %132 = vmatpush1.bf16.msra.mxu0 %v110
    %133 = vmatprep.subr.bf16.mxu0 0
    %134 = vmatpush1.bf16.msra.mxu0 %v111
    %135 = vmatprep.subr.bf16.mxu0 0
    %136 = vmatpush1.bf16.msra.mxu0 %v112
    %137 = vmatprep.subr.bf16.mxu0 0
    %138 = vmatpush1.bf16.msra.mxu0 0
    %139 = vmatprep.subr.bf16.mxu0 0
    %140 = vmatpush1.bf16.msra.mxu0 0
    %141 = vmatprep.subr.bf16.mxu0 0
    %142 = vmatpush1.bf16.msra.mxu0 0
    %143 = vmatprep.subr.bf16.mxu0 0
    %144 = vmatpush1.bf16.msra.mxu0 0
    %145 = vmatprep.subr.bf16.mxu0 0
    %146 = vmatpush1.bf16.msra.mxu0 0
    %147 = vmatprep.subr.bf16.mxu0 0
    %148 = vmatpush1.bf16.msra.mxu0 0
    %149 = vmatprep.subr.bf16.mxu0 0
    %150 = vmatpush1.bf16.msra.mxu0 0
    %151 = vmatprep.subr.bf16.mxu0 0
    %152 = vmatpush1.bf16.msra.mxu0 0
    %153 = vmatprep.mubr.bf16.mxu0 0
    %154 = vmatmul.mubr.bf16.gmra.mrb[0].mxu0 %v55
    %v155 = vpop.f32.mrb[0].mxu0
    %v156 = vadd.f32 %v72, %v155
    %v157 = vpop.f32.mrb[0].mxu0
    %v158 = vpop.f32.mrb[0].mxu0
    %v159 = vpop.f32.mrb[0].mxu0
    %160 = vdwg.mxu0
    %v161 = vtanh.pop %v156
    %v162 = vpack.c.bf16 %v161, %v161
    %s163 = scalar_lea.vmem [#allocation5], 64
    %v164 = vld [vmem:[%s163] sm:$0xf]
    %v165 = vld [vmem:[%s163 + $0x4] sm:$0xf]
    %v166 = vld [vmem:[%s163 + $0x8] sm:$0xf]
    %v167 = vld [vmem:[%s163 + $0xc] sm:$0xf]
    %v168 = vld [vmem:[%s163 + $0x10] sm:$0xf]
    %v169 = vld [vmem:[%s163 + $0x14] sm:$0xf]
    %v170 = vld [vmem:[%s163 + $0x18] sm:$0xf]
    %v171 = vld [vmem:[%s163 + $0x1c] sm:$0xf]
    %v172 = vld [vmem:[%s163 + $0x20] sm:$0xf]
    %v173 = vld [vmem:[%s163 + $0x24] sm:$0xf]
    %v174 = vld [vmem:[%s163 + $0x28] sm:$0xf]
    %v175 = vld [vmem:[%s163 + $0x2c] sm:$0xf]
    %v176 = vld [vmem:[%s163 + $0x30] sm:$0xf]
    %v177 = vld [vmem:[%s163 + $0x34] sm:$0xf]
    %v178 = vld [vmem:[%s163 + $0x38] sm:$0xf]
    %v179 = vld [vmem:[%s163 + $0x3c] sm:$0xf]
    %s180 = scalar_lea.vmem [#allocation7], 8
    %v181 = vld [vmem:[%s180] sm:$0xff]
    %v198 = vunpack.c.l.b16 %v164
    %v199 = vunpack.c.l.b16 %v165
    %v200 = vunpack.c.l.b16 %v166
    %v201 = vunpack.c.l.b16 %v167
    %v202 = vunpack.c.l.b16 %v168
    %v203 = vunpack.c.l.b16 %v169
    %v204 = vunpack.c.l.b16 %v170
    %v205 = vunpack.c.l.b16 %v171
    %v206 = vunpack.c.l.b16 %v172
    %v207 = vunpack.c.l.b16 %v173
    %v208 = vunpack.c.l.b16 %v174
    %v209 = vunpack.c.l.b16 %v175
    %v210 = vunpack.c.l.b16 %v176
    %v211 = vunpack.c.l.b16 %v177
    %v212 = vunpack.c.l.b16 %v178
    %v213 = vunpack.c.l.b16 %v179
    %v214 = vpack.c.b16 %v199, %v198
    %v215 = vpack.c.b16 %v201, %v200
    %v216 = vpack.c.b16 %v203, %v202
    %v217 = vpack.c.b16 %v205, %v204
    %v218 = vpack.c.b16 %v207, %v206
    %v219 = vpack.c.b16 %v209, %v208
    %v220 = vpack.c.b16 %v211, %v210
    %v221 = vpack.c.b16 %v213, %v212
    %230 = vmatprep.subr.bf16.mxu0 0
    %231 = vmatpush1.bf16.msra.mxu0 %v214
    %232 = vmatprep.subr.bf16.mxu0 0
    %233 = vmatpush1.bf16.msra.mxu0 %v215
    %234 = vmatprep.subr.bf16.mxu0 0
    %235 = vmatpush1.bf16.msra.mxu0 %v216
    %236 = vmatprep.subr.bf16.mxu0 0
    %237 = vmatpush1.bf16.msra.mxu0 %v217
    %238 = vmatprep.subr.bf16.mxu0 0
    %239 = vmatpush1.bf16.msra.mxu0 %v218
    %240 = vmatprep.subr.bf16.mxu0 0
    %241 = vmatpush1.bf16.msra.mxu0 %v219
    %242 = vmatprep.subr.bf16.mxu0 0
    %243 = vmatpush1.bf16.msra.mxu0 %v220
    %244 = vmatprep.subr.bf16.mxu0 0
    %245 = vmatpush1.bf16.msra.mxu0 %v221
    %246 = vmatprep.subr.bf16.mxu0 0
    %247 = vmatpush1.bf16.msra.mxu0 0
    %248 = vmatprep.subr.bf16.mxu0 0
    %249 = vmatpush1.bf16.msra.mxu0 0
    %250 = vmatprep.subr.bf16.mxu0 0
    %251 = vmatpush1.bf16.msra.mxu0 0
    %252 = vmatprep.subr.bf16.mxu0 0
    %253 = vmatpush1.bf16.msra.mxu0 0
    %254 = vmatprep.subr.bf16.mxu0 0
    %255 = vmatpush1.bf16.msra.mxu0 0
    %256 = vmatprep.subr.bf16.mxu0 0
    %257 = vmatpush1.bf16.msra.mxu0 0
    %258 = vmatprep.subr.bf16.mxu0 0
    %259 = vmatpush1.bf16.msra.mxu0 0
    %260 = vmatprep.subr.bf16.mxu0 0
    %261 = vmatpush1.bf16.msra.mxu0 0
    %262 = vmatprep.mubr.bf16.mxu0 0
    %263 = vmatmul.mubr.bf16.gmra.mrb[0].mxu0 %v162
    %v264 = vpop.f32.mrb[0].mxu0
    %v265 = vadd.f32 %v181, %v264
    %v266 = vpop.f32.mrb[0].mxu0
    %v267 = vpop.f32.mrb[0].mxu0
    %v268 = vpop.f32.mrb[0].mxu0
    %269 = vdwg.mxu0
    %v270 = vtanh.pop %v265
    %v271 = vpack.c.bf16 %v270, %v270
    %s272 = scalar_lea.vmem [#allocation5], 128
    %v273 = vld [vmem:[%s272] sm:$0xf]
    %v274 = vld [vmem:[%s272 + $0x4] sm:$0xf]
    %v275 = vld [vmem:[%s272 + $0x8] sm:$0xf]
    %v276 = vld [vmem:[%s272 + $0xc] sm:$0xf]
    %v277 = vld [vmem:[%s272 + $0x10] sm:$0xf]
    %v278 = vld [vmem:[%s272 + $0x14] sm:$0xf]
    %v279 = vld [vmem:[%s272 + $0x18] sm:$0xf]
    %v280 = vld [vmem:[%s272 + $0x1c] sm:$0xf]
    %v281 = vld [vmem:[%s272 + $0x20] sm:$0xf]
    %v282 = vld [vmem:[%s272 + $0x24] sm:$0xf]
    %v283 = vld [vmem:[%s272 + $0x28] sm:$0xf]
    %v284 = vld [vmem:[%s272 + $0x2c] sm:$0xf]
    %v285 = vld [vmem:[%s272 + $0x30] sm:$0xf]
    %v286 = vld [vmem:[%s272 + $0x34] sm:$0xf]
    %v287 = vld [vmem:[%s272 + $0x38] sm:$0xf]
    %v288 = vld [vmem:[%s272 + $0x3c] sm:$0xf]
    %s289 = scalar_lea.vmem [#allocation7], 16
    %v290 = vld [vmem:[%s289] sm:$0xff]
    %v307 = vunpack.c.l.b16 %v273
    %v308 = vunpack.c.l.b16 %v274
    %v309 = vunpack.c.l.b16 %v275
    %v310 = vunpack.c.l.b16 %v276
    %v311 = vunpack.c.l.b16 %v277
    %v312 = vunpack.c.l.b16 %v278
    %v313 = vunpack.c.l.b16 %v279
    %v314 = vunpack.c.l.b16 %v280
    %v315 = vunpack.c.l.b16 %v281
    %v316 = vunpack.c.l.b16 %v282
    %v317 = vunpack.c.l.b16 %v283
    %v318 = vunpack.c.l.b16 %v284
    %v319 = vunpack.c.l.b16 %v285
    %v320 = vunpack.c.l.b16 %v286
    %v321 = vunpack.c.l.b16 %v287
    %v322 = vunpack.c.l.b16 %v288
    %v323 = vpack.c.b16 %v308, %v307
    %v324 = vpack.c.b16 %v310, %v309
    %v325 = vpack.c.b16 %v312, %v311
    %v326 = vpack.c.b16 %v314, %v313
    %v327 = vpack.c.b16 %v316, %v315
    %v328 = vpack.c.b16 %v318, %v317
    %v329 = vpack.c.b16 %v320, %v319
    %v330 = vpack.c.b16 %v322, %v321
    %339 = vmatprep.subr.bf16.mxu0 0
    %340 = vmatpush1.bf16.msra.mxu0 %v323
    %341 = vmatprep.subr.bf16.mxu0 0
    %342 = vmatpush1.bf16.msra.mxu0 %v324
    %343 = vmatprep.subr.bf16.mxu0 0
    %344 = vmatpush1.bf16.msra.mxu0 %v325
    %345 = vmatprep.subr.bf16.mxu0 0
    %346 = vmatpush1.bf16.msra.mxu0 %v326
    %347 = vmatprep.subr.bf16.mxu0 0
    %348 = vmatpush1.bf16.msra.mxu0 %v327
    %349 = vmatprep.subr.bf16.mxu0 0
    %350 = vmatpush1.bf16.msra.mxu0 %v328
    %351 = vmatprep.subr.bf16.mxu0 0
    %352 = vmatpush1.bf16.msra.mxu0 %v329
    %353 = vmatprep.subr.bf16.mxu0 0
    %354 = vmatpush1.bf16.msra.mxu0 %v330
    %355 = vmatprep.subr.bf16.mxu0 0
    %356 = vmatpush1.bf16.msra.mxu0 0
    %357 = vmatprep.subr.bf16.mxu0 0
    %358 = vmatpush1.bf16.msra.mxu0 0
    %359 = vmatprep.subr.bf16.mxu0 0
    %360 = vmatpush1.bf16.msra.mxu0 0
    %361 = vmatprep.subr.bf16.mxu0 0
    %362 = vmatpush1.bf16.msra.mxu0 0
    %363 = vmatprep.subr.bf16.mxu0 0
    %364 = vmatpush1.bf16.msra.mxu0 0
    %365 = vmatprep.subr.bf16.mxu0 0
    %366 = vmatpush1.bf16.msra.mxu0 0
    %367 = vmatprep.subr.bf16.mxu0 0
    %368 = vmatpush1.bf16.msra.mxu0 0
    %369 = vmatprep.subr.bf16.mxu0 0
    %370 = vmatpush1.bf16.msra.mxu0 0
    %371 = vmatprep.mubr.bf16.mxu0 0
    %372 = vmatmul.mubr.bf16.gmra.mrb[0].mxu0 %v271
    %v373 = vpop.f32.mrb[0].mxu0
    %v374 = vadd.f32 %v290, %v373
    %v375 = vpop.f32.mrb[0].mxu0
    %v376 = vpop.f32.mrb[0].mxu0
    %v377 = vpop.f32.mrb[0].mxu0
    %378 = vdwg.mxu0
    %v379 = vtanh.pop %v374
    %v380 = vadd.f32 %v161, %v270
    %v381 = vadd.f32 %v380, %v379
    %v382 = vpack.c.bf16 %v381, %v381
    %s383 = scalar_lea.vmem [#allocation5], 192
    %v384 = vld [vmem:[%s383] sm:$0xf]
    %v385 = vld [vmem:[%s383 + $0x4] sm:$0xf]
    %v386 = vld [vmem:[%s383 + $0x8] sm:$0xf]
    %v387 = vld [vmem:[%s383 + $0xc] sm:$0xf]
    %v388 = vld [vmem:[%s383 + $0x10] sm:$0xf]
    %v389 = vld [vmem:[%s383 + $0x14] sm:$0xf]
    %v390 = vld [vmem:[%s383 + $0x18] sm:$0xf]
    %v391 = vld [vmem:[%s383 + $0x1c] sm:$0xf]
    %v392 = vld [vmem:[%s383 + $0x20] sm:$0xf]
    %v393 = vld [vmem:[%s383 + $0x24] sm:$0xf]
    %v394 = vld [vmem:[%s383 + $0x28] sm:$0xf]
    %v395 = vld [vmem:[%s383 + $0x2c] sm:$0xf]
    %v396 = vld [vmem:[%s383 + $0x30] sm:$0xf]
    %v397 = vld [vmem:[%s383 + $0x34] sm:$0xf]
    %v398 = vld [vmem:[%s383 + $0x38] sm:$0xf]
    %v399 = vld [vmem:[%s383 + $0x3c] sm:$0xf]
    %s400 = scalar_lea.vmem [#allocation7], 24
    %v401 = vld [vmem:[%s400] sm:$0xff]
    %v418 = vunpack.c.l.b16 %v384
    %v419 = vunpack.c.l.b16 %v385
    %v420 = vunpack.c.l.b16 %v386
    %v421 = vunpack.c.l.b16 %v387
    %v422 = vunpack.c.l.b16 %v388
    %v423 = vunpack.c.l.b16 %v389
    %v424 = vunpack.c.l.b16 %v390
    %v425 = vunpack.c.l.b16 %v391
    %v426 = vunpack.c.l.b16 %v392
    %v427 = vunpack.c.l.b16 %v393
    %v428 = vunpack.c.l.b16 %v394
    %v429 = vunpack.c.l.b16 %v395
    %v430 = vunpack.c.l.b16 %v396
    %v431 = vunpack.c.l.b16 %v397
    %v432 = vunpack.c.l.b16 %v398
    %v433 = vunpack.c.l.b16 %v399
    %v434 = vpack.c.b16 %v419, %v418
    %v435 = vpack.c.b16 %v421, %v420
    %v436 = vpack.c.b16 %v423, %v422
    %v437 = vpack.c.b16 %v425, %v424
    %v438 = vpack.c.b16 %v427, %v426
    %v439 = vpack.c.b16 %v429, %v428
    %v440 = vpack.c.b16 %v431, %v430
    %v441 = vpack.c.b16 %v433, %v432
    %450 = vmatprep.subr.bf16.mxu0 0
    %451 = vmatpush1.bf16.msra.mxu0 %v434
    %452 = vmatprep.subr.bf16.mxu0 0
    %453 = vmatpush1.bf16.msra.mxu0 %v435
    %454 = vmatprep.subr.bf16.mxu0 0
    %455 = vmatpush1.bf16.msra.mxu0 %v436
    %456 = vmatprep.subr.bf16.mxu0 0
    %457 = vmatpush1.bf16.msra.mxu0 %v437
    %458 = vmatprep.subr.bf16.mxu0 0
    %459 = vmatpush1.bf16.msra.mxu0 %v438
    %460 = vmatprep.subr.bf16.mxu0 0
    %461 = vmatpush1.bf16.msra.mxu0 %v439
    %462 = vmatprep.subr.bf16.mxu0 0
    %463 = vmatpush1.bf16.msra.mxu0 %v440
    %464 = vmatprep.subr.bf16.mxu0 0
    %465 = vmatpush1.bf16.msra.mxu0 %v441
    %466 = vmatprep.subr.bf16.mxu0 0
    %467 = vmatpush1.bf16.msra.mxu0 0
    %468 = vmatprep.subr.bf16.mxu0 0
    %469 = vmatpush1.bf16.msra.mxu0 0
    %470 = vmatprep.subr.bf16.mxu0 0
    %471 = vmatpush1.bf16.msra.mxu0 0
    %472 = vmatprep.subr.bf16.mxu0 0
    %473 = vmatpush1.bf16.msra.mxu0 0
    %474 = vmatprep.subr.bf16.mxu0 0
    %475 = vmatpush1.bf16.msra.mxu0 0
    %476 = vmatprep.subr.bf16.mxu0 0
    %477 = vmatpush1.bf16.msra.mxu0 0
    %478 = vmatprep.subr.bf16.mxu0 0
    %479 = vmatpush1.bf16.msra.mxu0 0
    %480 = vmatprep.subr.bf16.mxu0 0
    %481 = vmatpush1.bf16.msra.mxu0 0
    %482 = vmatprep.mubr.bf16.mxu0 0
    %483 = vmatmul.mubr.bf16.gmra.mrb[0].mxu0 %v382
    %v484 = vpop.f32.mrb[0].mxu0
    %v485 = vadd.f32 %v401, %v484
    %v486 = vpop.f32.mrb[0].mxu0
    %v487 = vpop.f32.mrb[0].mxu0
    %v488 = vpop.f32.mrb[0].mxu0
    %489 = vdwg.mxu0
    %490 = vst [vmem:[#allocation8] sm:$0xff] %v485
    // Predicated region
    $region26: #{tpu_custom_call.1} parent=1 // pred_check
      _
    $region27: #{tpu_custom_call.1} parent=1 // pred_check_branch
      %492 = sbr.rel (0) target = $region29
    $region28: #{tpu_custom_call.1} parent=1 // pred_region
      %s494 = ssub.s32 128, 128
      %495 = vsyncadd [#allocation4], %s494
      %s497 = sshll.u32 [#allocation8], 4
      %s498 = int_to_ptr.vmem [resolvable:$true] %s497
      %500 = dma.vmem_to_hbm [thread:$0]  %s498, 128, %s3, [#allocation4]
    $region29: #{tpu_custom_call.1} parent=1 // pred_fallthru
      _
    // Predicated region
    $region30: #{tpu_custom_call.1} parent=1 // pred_check
      _
    $region31: #{tpu_custom_call.1} parent=1 // pred_check_branch
      %502 = sbr.rel (0) target = $region33
    $region32: #{tpu_custom_call.1} parent=1 // pred_region
      %503 = dma.done [#allocation4], 128
    $region33: #{tpu_custom_call.1} parent=1 // pred_fallthru
      _
    %504 = vsyncpa [#allocation3], 1
    %505 = vsyncpa [#allocation6], 1
    %506 = vsyncpa [#allocation4], 1

</llo_original>
